<compile_context>
chip_gen: v5e
topology: v5e:2x2
jax: 0.10.0
libtpu: 0.0.40
codegen_flags: <defaults>
</compile_context>

<pallas_src>
import functools

import jax
import jax.numpy as jnp
from jax.experimental import pallas as pl
from jax.experimental.pallas import tpu as pltpu


def _simam_kernel(x_ref, o_ref, *, inv_hw, inv_n, e_lambda):
    # x_ref: (row_block, h*w) tile in VMEM. Each row is one (b, c) plane.
    x = x_ref[...].astype(jnp.float32)

    # Two independent lane-axis reductions (issue back-to-back on the XLU,
    # no full VPU pass between them).
    s1 = jnp.sum(x, axis=-1, keepdims=True)        # sum(x)
    s2 = jnp.sum(x * x, axis=-1, keepdims=True)    # sum(x^2)

    mu = s1 * inv_hw                               # per-row mean
    # sum((x - mu)^2) = sum(x^2) - HW * mu^2 = s2 - mu * s1.
    # Clamp tiny negative rounding error so denom stays positive.
    s = jnp.maximum(s2 - mu * s1, 0.0)

    d = x - mu
    d = d * d                                      # (x - mu)^2

    # y = d / (4 * (s / n + e_lambda)) + 0.5
    #   = d * 0.25 * 1/(s * inv_n + e_lambda) + 0.5
    r = pl.reciprocal(s * inv_n + e_lambda, approx=True)   # EUP slot
    y = d * (0.25 * r) + 0.5

    o_ref[...] = (x * jax.nn.sigmoid(y)).astype(o_ref.dtype)


def _pick_row_block(rows, cols):
    """Pick a row-block size: ~2 MiB of f32 per block, sublane-aligned."""
    target_bytes = 2 * 1024 * 1024
    rb = max(8, target_bytes // (cols * 4))
    # Never exceed the (8-padded) row extent of the problem.
    rows_padded = pl.cdiv(rows, 8) * 8
    rb = min(rb, rows_padded)
    # Multiple of 32 covers f32 (8), bf16 (16) and int8/fp8 (32) sublane
    # packing; fall back to 8 for tiny row counts.
    align = 32 if rb >= 32 else 8
    rb = max(align, (rb // align) * align)
    return int(rb)


def simam(x, e_lambda=1e-4, row_block=None):
    """SimAM forward pass. x: (b, c, h, w), any float dtype."""
    b, c, h, w = x.shape
    rows = b * c
    cols = h * w
    n = float(cols - 1)

    x2d = x.reshape(rows, cols)

    if row_block is None:
        row_block = _pick_row_block(rows, cols)

    grid = pl.cdiv(rows, row_block)

    kernel = functools.partial(
        _simam_kernel,
        inv_hw=1.0 / float(cols),
        inv_n=1.0 / n,
        e_lambda=float(e_lambda),
    )

    # NOTE: cols is kept at full extent so the lane-axis reduction is a single
    # pass; for spatial sizes that are not a multiple of 128 (e.g. 14x14) the
    # store is a masked partial vst, which is still correct.
    out2d = pl.pallas_call(
        kernel,
        out_shape=jax.ShapeDtypeStruct((rows, cols), x.dtype),
        grid_spec=pltpu.PrefetchScalarGridSpec(
            num_scalar_prefetch=0,
            grid=(grid,),
            in_specs=[pl.BlockSpec((row_block, cols), lambda i: (i, 0))],
            out_specs=pl.BlockSpec((row_block, cols), lambda i: (i, 0)),
        ),
        compiler_params=pltpu.CompilerParams(
            dimension_semantics=("parallel",),
            vmem_limit_bytes=48 * 1024 * 1024,
        ),
    )(x2d)

    return out2d.reshape(b, c, h, w)


def simam_reference(x, e_lambda=1e-4):
    """Pure-JAX reference matching the PyTorch forward exactly."""
    b, c, h, w = x.shape
    n = w * h - 1
    mu = jnp.mean(x, axis=(2, 3), keepdims=True)
    d = (x - mu) ** 2
    y = d / (4.0 * (jnp.sum(d, axis=(2, 3), keepdims=True) / n + e_lambda)) + 0.5
    return x * jax.nn.sigmoid(y)


if __name__ == "__main__":
    key = jax.random.PRNGKey(0)
    # Small shape consistent with an NCHW conv feature map.
    b, c, h, w = 2, 4, 16, 16
    x = jax.random.normal(key, (b, c, h, w), dtype=jnp.float32)

    out = simam(x)
    out = jax.block_until_ready(out)

    ref = simam_reference(x)
    assert out.shape == (b, c, h, w)
    # approx reciprocal introduces a small relative error in 1/denom; the
    # downstream sigmoid damps it, so 1e-3 tolerance is comfortably tight.
    assert jnp.allclose(out, ref, atol=1e-3, rtol=1e-3), "mismatch vs reference"

    print("KERNEL_OK")
</pallas_src>

<mosaic_0001>
module attributes {stable_mosaic.version = 11 : i64} {
  func.func @_simam_kernel(%arg0: i32, %arg1: memref<8x256xf32, #tpu.memory_space<vmem>>, %arg2: memref<8x256xf32, #tpu.memory_space<vmem>>) attributes {dimension_semantics = [#tpu.dimension_semantics<parallel>], iteration_bounds = array<i64: 1>, scalar_prefetch = 0 : i64, scratch_operands = 0 : i64, tpu.core_type = #tpu.core_type<tc>, window_params = [{transform_indices = @transform_0, window_bounds = array<i64: 8, 256>}, {transform_indices = @transform_1, window_bounds = array<i64: 8, 256>}]} {
    %c0 = arith.constant 0 : index
    %c0_0 = arith.constant 0 : index
    %0 = vector.load %arg1[%c0, %c0_0] : memref<8x256xf32, #tpu.memory_space<vmem>>, vector<8x256xf32>
    %cst = arith.constant dense<0.000000e+00> : vector<8xf32>
    %1 = vector.multi_reduction <add>, %0, %cst [1] : vector<8x256xf32> to vector<8xf32>
    %2 = vector.shape_cast %1 : vector<8xf32> to vector<8x1xf32>
    %3 = arith.mulf %0, %0 : vector<8x256xf32>
    %cst_1 = arith.constant dense<0.000000e+00> : vector<8xf32>
    %4 = vector.multi_reduction <add>, %3, %cst_1 [1] : vector<8x256xf32> to vector<8xf32>
    %5 = vector.shape_cast %4 : vector<8xf32> to vector<8x1xf32>
    %cst_2 = arith.constant 3.906250e-03 : f32
    %6 = vector.broadcast %cst_2 : f32 to vector<8x1xf32>
    %7 = arith.mulf %2, %6 : vector<8x1xf32>
    %8 = arith.mulf %7, %2 : vector<8x1xf32>
    %9 = arith.subf %5, %8 : vector<8x1xf32>
    %cst_3 = arith.constant 0.000000e+00 : f32
    %10 = vector.broadcast %cst_3 : f32 to vector<8x1xf32>
    %11 = arith.maximumf %9, %10 : vector<8x1xf32>
    %12 = vector.broadcast %7 : vector<8x1xf32> to vector<8x256xf32>
    %13 = arith.subf %0, %12 : vector<8x256xf32>
    %14 = arith.mulf %13, %13 : vector<8x256xf32>
    %cst_4 = arith.constant 0.00392156886 : f32
    %15 = vector.broadcast %cst_4 : f32 to vector<8x1xf32>
    %16 = arith.mulf %11, %15 : vector<8x1xf32>
    %cst_5 = arith.constant 9.99999974E-5 : f32
    %17 = vector.broadcast %cst_5 : f32 to vector<8x1xf32>
    %18 = arith.addf %16, %17 : vector<8x1xf32>
    %19 = tpu.reciprocal %18 {approx = true} : vector<8x1xf32> -> vector<8x1xf32>
    %cst_6 = arith.constant 2.500000e-01 : f32
    %20 = vector.broadcast %cst_6 : f32 to vector<8x1xf32>
    %21 = arith.mulf %20, %19 : vector<8x1xf32>
    %22 = vector.broadcast %21 : vector<8x1xf32> to vector<8x256xf32>
    %23 = arith.mulf %14, %22 : vector<8x256xf32>
    %cst_7 = arith.constant 5.000000e-01 : f32
    %24 = vector.broadcast %cst_7 : f32 to vector<8x256xf32>
    %25 = arith.addf %23, %24 : vector<8x256xf32>
    %26 = arith.negf %25 : vector<8x256xf32>
    %27 = math.exp %26 : vector<8x256xf32>
    %cst_8 = arith.constant 1.000000e+00 : f32
    %28 = vector.broadcast %cst_8 : f32 to vector<8x256xf32>
    %29 = arith.addf %28, %27 : vector<8x256xf32>
    %30 = arith.divf %28, %29 : vector<8x256xf32>
    %31 = arith.mulf %0, %30 : vector<8x256xf32>
    %c0_9 = arith.constant 0 : index
    %c0_10 = arith.constant 0 : index
    %32 = vector.load %arg2[%c0_9, %c0_10] : memref<8x256xf32, #tpu.memory_space<vmem>>, vector<8x256xf32>
    tpu.vector_store %arg2[%c0_9, %c0_10], %31 {strides = array<i32>} : memref<8x256xf32, #tpu.memory_space<vmem>>, vector<8x256xf32>,
    return
  }
  func.func @transform_0(%arg0: i32) -> (i32, i32) {
    %c0_i32 = arith.constant 0 : i32
    %c0_i32_0 = arith.constant 0 : i32
    return %arg0, %c0_i32 : i32, i32
  }
  func.func @transform_1(%arg0: i32) -> (i32, i32) {
    %c0_i32 = arith.constant 0 : i32
    %c0_i32_0 = arith.constant 0 : i32
    return %arg0, %c0_i32 : i32, i32
  }
}

</mosaic_0001>

<llo_original>
// kernel: tpu_custom_call.1
$region0: #{tpu_custom_call.1}
  #allocation0 [shape = 'u32[]', space=smem, size = 0x4, offset = 0x4, fixed_abs, tag = 'smem constant byte address 0x4 - core index']
  #allocation1 [shape = 'u32[72,128]{1,0:T(1,128)}', space=vmem, size = 0x9000, scoped, tag = 'internal scratch']
  %s0 = inlined_call_operand.hbm [shape: f32[8,256], index: 0, kind: input, shape index: {}]
  %s1 = inlined_call_operand.hbm [shape: f32[8,256], index: 1, kind: output, shape index: {}]
  %s2 = sld [smem:[#allocation0]]
  $region18: #{tpu_custom_call.1} parent=0
    _
  %s4 = ssub.s32 1, %s2
  %s5 = scalar_select 0, %s4, %s2
  $region1: #{tpu_custom_call.1} parent=0
    #allocation2 [shape = 'u8[8192]{0}', space=vmem, size = 0x2000, scoped, tag = 'input window, operand 0, single buffered']
    #allocation3 [shape = 's32[1]{0}', space=sflag, size = 0x4, scoped, tag = 'scoped memory for tpu_custom_call.1']
    #allocation4 [shape = 's32[1]{0}', space=sflag, size = 0x4, scoped, tag = 'scoped memory for tpu_custom_call.1']
    #allocation5 [shape = 'u8[8192]{0}', space=vmem, size = 0x2000, scoped, tag = 'output window, operand 0, single buffered']
    %6 = vsyncpa [#allocation3], 0
    %7 = vsyncpa [#allocation4], 0
    // Predicated region
    $region2: #{tpu_custom_call.1} parent=1 // pred_check
      _
    $region3: #{tpu_custom_call.1} parent=1 // pred_check_branch
      %9 = sbr.rel (0) target = $region5
    $region4: #{tpu_custom_call.1} parent=1 // pred_region
      %11 = vsyncadd [#allocation3], 0
      %s13 = sshll.u32 %s0, 4
      %s14 = int_to_ptr.hbm [resolvable:$true] %s13
      %s15 = sshll.u32 [#allocation2], 4
      %s16 = int_to_ptr.vmem [resolvable:$true] %s15
      %18 = dma.hbm_to_vmem [thread:$0]  %s14, 256, %s16, [#allocation3]
    $region5: #{tpu_custom_call.1} parent=1 // pred_fallthru
      _
    // Predicated region
    $region6: #{tpu_custom_call.1} parent=1 // pred_check
      _
    $region7: #{tpu_custom_call.1} parent=1 // pred_check_branch
      %20 = sbr.rel (0) target = $region9
    $region8: #{tpu_custom_call.1} parent=1 // pred_region
      %22 = dma.done [#allocation3], 256
    $region9: #{tpu_custom_call.1} parent=1 // pred_fallthru
      _
    %v23 = vld [vmem:[#allocation2] sm:$0xff]
    %v24 = vld [vmem:[#allocation2 + $0x8] sm:$0xff]
    %v25 = vadd.f32 %v23, %v24
    %26 = vadd.xlane.f32.xlu0 %v25
    %v27 = vpop.xlane.xlu0 %26
    %v28 = vmul.f32 %v23, %v23
    %v29 = vmul.f32 %v24, %v24
    %v30 = vadd.f32 %v28, %v29
    %31 = vadd.xlane.f32.xlu0 %v30
    %v32 = vpop.xlane.xlu0 %31
    %v33 = vmul.f32 %v27, 0.00390625
    %v34 = vmul.f32 %v33, %v27
    %v35 = vsub.f32 %v32, %v34
    %v36 = vmax.f32 %v35, 0.0
    %v37 = vsub.f32 %v23, %v33
    %v38 = vsub.f32 %v24, %v33
    %v39 = vmul.f32 %v37, %v37
    %v40 = vmul.f32 %v38, %v38
    %v41 = vmul.f32 %v36, 0.003921569
    %v42 = vadd.f32 %v41, 0.0001
    %v43 = vrcp.pop %v42
    %v44 = vmul.f32 %v43, 0.25
    %v45 = vmul.f32 %v39, %v44
    %v46 = vmul.f32 %v40, %v44
    %v47 = vadd.f32 %v45, 0.5
    %v48 = vadd.f32 %v46, 0.5
    %v49 = vxor.u32 %v47, 2147483648
    %v50 = vxor.u32 %v48, 2147483648
    %v51 = vmul.f32 %v49, 1.442695
    %v52 = vpow.pop %v51
    %v53 = vmul.f32 %v50, 1.442695
    %v54 = vpow.pop %v53
    %v55 = vadd.f32 %v52, 1.0
    %v56 = vadd.f32 %v54, 1.0
    %v57 = vrcp.pop %v55
    %v58 = vmul.f32 %v55, %v57
    %v59 = vsub.f32 1.0, %v58
    %v60 = vmul.f32 %v57, %v59
    %v61 = vadd.f32 %v57, %v60
    %vm62 = vweird.f32 %v55
    %vm63 = vweird.f32 %v57
    %vm64 = vmor %vm62, %vm63
    %v65 = vsel %vm64, %v57, %v61
    %v66 = vand.u32 2147483647, %v55
    %vm67 = vcmp.eq.f32.partialorder %v66, 8.507059e+37
    %v68 = vand.u32 %v55, 2147483648
    %v69 = vor.u32 1.1754944e-38, %v68
    %v70 = vsel %vm67, %v69, %v65
    %v71 = vmul.f32 1.0, %v70
    %v72 = vrcp.pop %v56
    %v73 = vmul.f32 %v56, %v72
    %v74 = vsub.f32 1.0, %v73
    %v75 = vmul.f32 %v72, %v74
    %v76 = vadd.f32 %v72, %v75
    %vm77 = vweird.f32 %v56
    %vm78 = vweird.f32 %v72
    %vm79 = vmor %vm77, %vm78
    %v80 = vsel %vm79, %v72, %v76
    %v81 = vand.u32 2147483647, %v56
    %vm82 = vcmp.eq.f32.partialorder %v81, 8.507059e+37
    %v83 = vand.u32 %v56, 2147483648
    %v84 = vor.u32 1.1754944e-38, %v83
    %v85 = vsel %vm82, %v84, %v80
    %v86 = vmul.f32 1.0, %v85
    %v87 = vmul.f32 %v23, %v71
    %v88 = vmul.f32 %v24, %v86
    %89 = vst [vmem:[#allocation5] sm:$0xff] %v87
    %90 = vst [vmem:[#allocation5 + $0x8] sm:$0xff] %v88
    // Predicated region
    $region10: #{tpu_custom_call.1} parent=1 // pred_check
      _
    $region11: #{tpu_custom_call.1} parent=1 // pred_check_branch
      %92 = sbr.rel (0) target = $region13
    $region12: #{tpu_custom_call.1} parent=1 // pred_region
      %94 = vsyncadd [#allocation4], 0
      %s96 = sshll.u32 [#allocation5], 4
      %s97 = int_to_ptr.vmem [resolvable:$true] %s96
      %s98 = sshll.u32 %s1, 4
      %s99 = int_to_ptr.hbm [resolvable:$true] %s98
      %101 = dma.vmem_to_hbm [thread:$0]  %s97, 256, %s99, [#allocation4]
    $region13: #{tpu_custom_call.1} parent=1 // pred_fallthru
      _
    // Predicated region
    $region14: #{tpu_custom_call.1} parent=1 // pred_check
      _
    $region15: #{tpu_custom_call.1} parent=1 // pred_check_branch
      %103 = sbr.rel (0) target = $region17
    $region16: #{tpu_custom_call.1} parent=1 // pred_region
      %105 = dma.done [#allocation4], 256
    $region17: #{tpu_custom_call.1} parent=1 // pred_fallthru
      _
    %106 = vsyncpa [#allocation3], 1
    %107 = vsyncpa [#allocation4], 1

</llo_original>
